<compile_context>
chip_gen: v5e
topology: v5e:2x2
jax: 0.10.0
libtpu: 0.0.40
codegen_flags: <defaults>
</compile_context>

<pallas_src>
import functools

import jax
import jax.numpy as jnp
from jax.experimental import pallas as pl
from jax.experimental.pallas import tpu as pltpu


def _round_up(n, m):
    return ((n + m - 1) // m) * m


# --------------------------------------------------------------------------
# kernels
# --------------------------------------------------------------------------
def _cos_block(q_f32, knt_bf16):
    """cos_sim of an un-normalized f32 query tile vs pre-normalized, pre-
    transposed bf16 keys (key_d_pad, pool_pad): plain [M,K]@[K,N] MXU feed."""
    sumsq = jnp.sum(q_f32 * q_f32, axis=-1, keepdims=True)        # f32 reduce
    inv_q = jax.lax.rsqrt(jnp.maximum(sumsq, 1e-24))              # == 1/max(||q||, 1e-12)
    raw = jnp.dot(q_f32.astype(jnp.bfloat16), knt_bf16,
                  preferred_element_type=jnp.float32)             # bf16 in / f32 acc
    return raw * inv_q                                            # rank-1 rescale of result


def _cos_kernel(q_ref, knt_ref, cos_ref):
    """Train(bootstrap) path: only cos_sim is needed — no prompt pool touched."""
    # TODO(synk): if pool_pad ever grows past 128, emit only the task_id column.
    cos_ref[...] = _cos_block(q_ref[...], knt_ref[...])


def _top1_kernel(pool, q_ref, knt_ref, idx_ref):
    """Eval path: cos_sim stays in VMEM; only a (tb, 128) int32 index block is written."""
    cos = _cos_block(q_ref[...], knt_ref[...])
    tb, pp = cos.shape
    col = jax.lax.broadcasted_iota(jnp.int32, (tb, pp), 1)
    cos = jnp.where(col < pool, cos, -jnp.inf)                    # mask padded pool columns
    m = jnp.max(cos, axis=1, keepdims=True)
    # first index attaining the row max (torch.topk k=1 behavior; ties -> lowest idx)
    idx = jnp.min(jnp.where(cos == m, col, pp), axis=1, keepdims=True)   # (tb, 1)
    idx_ref[...] = jnp.broadcast_to(idx, idx_ref.shape)           # (tb, 128) lane-dense


_GATHER_BUFS = 4  # in-flight row DMAs


def _gather_kernel(idx_ref, p_hbm, out_ref, sem):
    """Row gather: in-kernel loop over batch rows, multi-buffered manual DMAs
    from the HBM prompt-pool slab into the lane-dense VMEM output block.

    idx_ref: SMEM (b_pad,) int32 (scalar prefetch)
    p_hbm:   (pool, LDp) f32, memory_space=pl.ANY (stays in HBM)
    out_ref: (chunk, LDp) f32 VMEM output block
    sem:     DMA semaphores (_GATHER_BUFS,)
    """
    chunk = out_ref.shape[0]
    nbuf = sem.shape[0]
    base = pl.program_id(0) * chunk

    def cp(r):
        row = idx_ref[base + r]
        return pltpu.make_async_copy(
            p_hbm.at[pl.ds(row, 1), :],
            out_ref.at[pl.ds(r, 1), :],
            sem.at[r % nbuf])

    # prime the pipeline
    @pl.loop(0, min(nbuf, chunk))
    def _(r):
        cp(r).start()

    @pl.loop(0, chunk)
    def _(r):
        cp(r).wait()

        @pl.when(r + nbuf < chunk)
        def _():
            cp(r + nbuf).start()


# --------------------------------------------------------------------------
# wrappers
# --------------------------------------------------------------------------
def _pick_tb(B, cap):
    """Batch tile: as large as `cap`, but keep >=2 grid steps when B > 8 so the
    'parallel' axis can split across v7x's two TensorCores."""
    b8 = _round_up(max(B, 1), 8)
    if b8 <= 8:
        return 8
    return max(8, min(cap, _round_up(b8 // 2, 8)))


def _prep_query(x_querry, key_d_pad, tb):
    """Zero-pad/convert the query only when needed (skip the extra HBM copy in
    the aligned production case)."""
    B, key_d = x_querry.shape
    b_pad = _round_up(B, tb)
    q = x_querry.astype(jnp.float32)
    if b_pad != B or key_d_pad != key_d:
        q = jnp.pad(q, ((0, b_pad - B), (0, key_d_pad - key_d)))
    return q, b_pad


def e_prompt_cos_sim(x_querry, knt_pad, pool):
    """normalize(q) @ normalize(K).T -> (B, pool) f32 (keys pre-normalized,
    pre-transposed, bf16, padded)."""
    B = x_querry.shape[0]
    key_d_pad, pool_pad = knt_pad.shape
    tb = _pick_tb(B, cap=512)
    q, b_pad = _prep_query(x_querry, key_d_pad, tb)
    cos = pl.pallas_call(
        _cos_kernel,
        grid=(b_pad // tb,),
        in_specs=[pl.BlockSpec((tb, key_d_pad), lambda i: (i, 0)),
                  pl.BlockSpec((key_d_pad, pool_pad), lambda i: (0, 0))],
        out_specs=pl.BlockSpec((tb, pool_pad), lambda i: (i, 0)),
        out_shape=jax.ShapeDtypeStruct((b_pad, pool_pad), jnp.float32),
        compiler_params=pltpu.CompilerParams(dimension_semantics=("parallel",)),
    )(q, knt_pad)
    return cos[:B, :pool]


def e_prompt_top1_idx(x_querry, knt_pad, pool):
    """argmax_k cos_sim(q, K) -> (B,) int32; cos_sim never written to HBM."""
    B = x_querry.shape[0]
    key_d_pad, pool_pad = knt_pad.shape
    tb = _pick_tb(B, cap=256)  # keep live (tb, pool_pad) cos + iota under the vreg file
    q, b_pad = _prep_query(x_querry, key_d_pad, tb)
    idx = pl.pallas_call(
        functools.partial(_top1_kernel, pool),
        grid=(b_pad // tb,),
        in_specs=[pl.BlockSpec((tb, key_d_pad), lambda i: (i, 0)),
                  pl.BlockSpec((key_d_pad, pool_pad), lambda i: (0, 0))],
        out_specs=pl.BlockSpec((tb, 128), lambda i: (i, 0)),
        out_shape=jax.ShapeDtypeStruct((b_pad, 128), jnp.int32),
        compiler_params=pltpu.CompilerParams(dimension_semantics=("parallel",)),
    )(q, knt_pad)
    return idx[:B, 0]


def _gather_chunks(B):
    b8 = _round_up(max(B, 1), 8)
    if b8 >= 16:
        chunk = _round_up(b8 // 2, 8)   # 2 chunks -> both v7x TensorCores get work
        return chunk, 2 * chunk
    return b8, b8


def e_prompt_gather(p, idx):
    """p[idx] via an in-kernel multi-buffered DMA gather from HBM (exact f32 copy).

    The pool is flattened to a lane-dense (pool, L*D) slab (padded to a multiple
    of 128 lanes when emb_d is small) so the output block stays unmasked.
    # TODO(synk): sort/group idx outside the kernel to collapse repeated rows
    #             into a single DMA when batches share one prompt.
    """
    B = idx.shape[0]
    pool, L, D = p.shape
    LD = L * D
    LDp = _round_up(LD, 128)
    p_flat = p.reshape(pool, LD)
    if LDp != LD:
        p_flat = jnp.pad(p_flat, ((0, 0), (0, LDp - LD)))

    chunk, b_pad = _gather_chunks(B)
    n_chunks = b_pad // chunk
    idx_pad = jnp.pad(idx.astype(jnp.int32), (0, b_pad - B))

    out = pl.pallas_call(
        _gather_kernel,
        grid_spec=pltpu.PrefetchScalarGridSpec(
            num_scalar_prefetch=1,
            grid=(n_chunks,),
            in_specs=[pl.BlockSpec(memory_space=pl.ANY)],
            out_specs=pl.BlockSpec((chunk, LDp), lambda c, idx_ref: (c, 0)),
            scratch_shapes=[pltpu.SemaphoreType.DMA((_GATHER_BUFS,))],
        ),
        out_shape=jax.ShapeDtypeStruct((b_pad, LDp), p.dtype),
        compiler_params=pltpu.CompilerParams(dimension_semantics=("parallel",)),
    )(idx_pad, p_flat)
    return out[:B, :LD].reshape(B, L, D)


# --------------------------------------------------------------------------
# module
# --------------------------------------------------------------------------
class DualPromptPallas:
    """JAX/Pallas port of models/zoo.py::DualPrompt (forward semantics)."""

    def __init__(self, emb_d, n_tasks, prompt_param, key_dim=768, seed=0):
        self.task_count = 0
        self.emb_d = emb_d
        self.key_d = key_dim
        self.n_tasks = n_tasks
        self._init_smart(emb_d, prompt_param)

        # tensor_prompt(...) with ortho=False -> nn.init.uniform_ in [0, 1)
        key = jax.random.PRNGKey(seed)
        self.params = {}
        for g in self.g_layers:
            key, sk = jax.random.split(key)
            self.params[f'g_p_{g}'] = jax.random.uniform(
                sk, (self.g_p_length, emb_d), jnp.float32)
        for e in self.e_layers:
            key, sk1, sk2 = jax.random.split(key, 3)
            self.params[f'e_p_{e}'] = jax.random.uniform(
                sk1, (self.e_pool_size, self.e_p_length, emb_d), jnp.float32)
            self.params[f'e_k_{e}'] = jax.random.uniform(
                sk2, (self.e_pool_size, self.key_d), jnp.float32)

        # Hoisted out of the kernel: keys are parameters, so L2-normalize,
        # TRANSPOSE to (key_d, pool), zero-pad to (x128, x128) and cast to
        # bf16 once at init (natural [M,K]@[K,N] MXU weight feed in-kernel).
        # Selected prompts themselves stay f32 and are DMA-copied exactly.
        # TODO(synk): if e_k is updated during training, refresh this cache.
        self._knt_pad = {}
        pool_pad = _round_up(self.e_pool_size, 128)
        key_d_pad = _round_up(self.key_d, 128)
        for e in self.e_layers:
            K = self.params[f'e_k_{e}']
            kn = K / jnp.maximum(jnp.linalg.norm(K, axis=1, keepdims=True), 1e-12)
            knt = jnp.pad(kn.T, ((0, key_d_pad - self.key_d),
                                 (0, pool_pad - self.e_pool_size)))
            self._knt_pad[e] = knt.astype(jnp.bfloat16)

    def _init_smart(self, emb_d, prompt_param):
        self.top_k = 1
        self.task_id_bootstrap = True
        self.g_layers = [0, 1]
        self.e_layers = [2, 3, 4]
        self.g_p_length = int(prompt_param[2])
        self.e_p_length = int(prompt_param[1])
        self.e_pool_size = int(prompt_param[0])

    def process_task_count(self):
        self.task_count += 1

    def forward(self, x_querry, l, x_block, train=False, task_id=None):
        loss = 0
        e_valid = False
        if l in self.e_layers:
            e_valid = True
            B, _ = x_querry.shape
            p = self.params[f'e_p_{l}']
            knt_pad = self._knt_pad[l]
            i = self.e_p_length // 2
            if train and self.task_id_bootstrap:
                # Only cos_sim is needed: no prompt-pool DMA, no gather.
                cos_sim = e_prompt_cos_sim(x_querry, knt_pad, self.e_pool_size)
                loss = jnp.sum(1.0 - cos_sim[:, task_id])
                P_ = jnp.broadcast_to(p[task_id], (B, self.e_p_length, self.emb_d))
                Ek = P_[:, :i, :].reshape(B, -1, self.emb_d)
                Ev = P_[:, i:, :].reshape(B, -1, self.emb_d)
            elif train:
                # TODO(synk): reproduces the reference's cos_sim[:, k_idx]
                # broadcast-indexed (B,B) loss; selection argmax is cheap in XLA.
                cos_sim = e_prompt_cos_sim(x_querry, knt_pad, self.e_pool_size)
                k_idx = jnp.argmax(cos_sim, axis=1)            # first max, top_k = 1
                loss = jnp.sum(1.0 - cos_sim[:, k_idx])
                P_ = e_prompt_gather(p, k_idx)
                Ek = P_[:, :i, :].reshape(B, -1, self.emb_d)
                Ev = P_[:, i:, :].reshape(B, -1, self.emb_d)
            else:
                # Eval: top-1 index kernel (cos stays in VMEM) + DMA row gather.
                k_idx = e_prompt_top1_idx(x_querry, knt_pad, self.e_pool_size)
                P_ = e_prompt_gather(p, k_idx)
                Ek = P_[:, :i, :].reshape(B, -1, self.emb_d)
                Ev = P_[:, i:, :].reshape(B, -1, self.emb_d)

        g_valid = False
        if l in self.g_layers:
            g_valid = True
            j = self.g_p_length // 2
            gp = self.params[f'g_p_{l}']
            B = x_querry.shape[0]
            P_ = jnp.broadcast_to(gp, (B, self.g_p_length, self.emb_d))
            Gk = P_[:, :j, :]
            Gv = P_[:, j:, :]

        if e_valid and g_valid:
            Pk = jnp.concatenate((Ek, Gk), axis=1)
            Pv = jnp.concatenate((Ev, Gv), axis=1)
            p_return = [Pk, Pv]
        elif e_valid:
            p_return = [Ek, Ev]
        elif g_valid:
            p_return = [Gk, Gv]
            loss = 0
        else:
            p_return = None
            loss = 0

        if train:
            return p_return, loss, x_block
        else:
            return p_return, 0, x_block


if __name__ == "__main__":
    # Small, module-consistent shapes.
    emb_d = 32
    key_dim = 64
    n_tasks = 3
    prompt_param = [6, 8, 6]   # [e_pool_size, e_p_length, g_p_length]
    B = 2

    model = DualPromptPallas(emb_d, n_tasks, prompt_param, key_dim=key_dim, seed=0)

    key = jax.random.PRNGKey(0)
    k1, k2 = jax.random.split(key)
    x_querry = jax.random.normal(k1, (B, key_dim), jnp.float32)
    x_block = jax.random.normal(k2, (B, 8, emb_d), jnp.float32)

    # e-layer, eval path: top-1 index kernel + in-kernel-loop DMA gather kernel
    (ek, ev), loss0, xb = model.forward(x_querry, l=2, x_block=x_block, train=False)
    jax.block_until_ready((ek, ev, xb))
    assert ek.shape == (B, prompt_param[1] // 2, emb_d)
    assert ev.shape == (B, prompt_param[1] // 2, emb_d)
    # each selected prompt must be an exact (f32) copy of some pool row
    p_full = jnp.concatenate((ek, ev), axis=1)                     # (B, L, D)
    p_pool = model.params['e_p_2']                                 # (pool, L, D)
    d = jnp.min(jnp.max(jnp.abs(p_full[:, None] - p_pool[None]), axis=(2, 3)), axis=1)
    assert float(jnp.max(d)) == 0.0

    # e-layer, train path with task_id bootstrap (cos-only kernel drives the loss)
    (ek_t, ev_t), loss_t, _ = model.forward(x_querry, l=3, x_block=x_block,
                                            train=True, task_id=1)
    jax.block_until_ready((ek_t, ev_t, loss_t))
    K3 = model.params['e_k_3']
    Kn3 = K3 / jnp.maximum(jnp.linalg.norm(K3, axis=1, keepdims=True), 1e-12)
    qn = x_querry / jnp.maximum(jnp.linalg.norm(x_querry, axis=1, keepdims=True), 1e-12)
    loss_ref = jnp.sum(1.0 - (qn @ Kn3.T)[:, 1])
    assert abs(float(loss_t) - float(loss_ref)) < 0.05             # bf16 MXU inputs

    # e-layer, train path without bootstrap (cos kernel + XLA argmax + DMA gather)
    model.task_id_bootstrap = False
    (ek_n, ev_n), loss_n, _ = model.forward(x_querry, l=4, x_block=x_block, train=True)
    jax.block_until_ready((ek_n, ev_n, loss_n))
    model.task_id_bootstrap = True
    assert ek_n.shape == (B, prompt_param[1] // 2, emb_d)
    assert bool(jnp.isfinite(loss_n))

    # g-layer path (broadcast/slice glue)
    (gk, gv), loss_g, _ = model.forward(x_querry, l=0, x_block=x_block, train=False)
    jax.block_until_ready((gk, gv))
    assert gk.shape == (B, prompt_param[2] // 2, emb_d)

    print("KERNEL_OK")
</pallas_src>

<mosaic_0001>
module attributes {stable_mosaic.version = 11 : i64} {
  func.func @_top1_kernel(%arg0: i32, %arg1: memref<8x128xf32, #tpu.memory_space<vmem>>, %arg2: memref<128x128xbf16, #tpu.memory_space<vmem>>, %arg3: memref<8x128xi32, #tpu.memory_space<vmem>>) attributes {dimension_semantics = [#tpu.dimension_semantics<parallel>], iteration_bounds = array<i64: 1>, scalar_prefetch = 0 : i64, scratch_operands = 0 : i64, tpu.core_type = #tpu.core_type<tc>, window_params = [{transform_indices = @transform_0, window_bounds = array<i64: 8, 128>}, {pipeline_mode = #tpu.pipeline_mode<synchronous>, transform_indices = @transform_1, window_bounds = array<i64: 128, 128>}, {transform_indices = @transform_2, window_bounds = array<i64: 8, 128>}]} {
    %c0 = arith.constant 0 : index
    %c0_0 = arith.constant 0 : index
    %0 = vector.load %arg1[%c0, %c0_0] : memref<8x128xf32, #tpu.memory_space<vmem>>, vector<8x128xf32>
    %c0_1 = arith.constant 0 : index
    %c0_2 = arith.constant 0 : index
    %1 = vector.load %arg2[%c0_1, %c0_2] : memref<128x128xbf16, #tpu.memory_space<vmem>>, vector<128x128xbf16>
    %2 = arith.mulf %0, %0 : vector<8x128xf32>
    %cst = arith.constant dense<0.000000e+00> : vector<8xf32>
    %3 = vector.multi_reduction <add>, %2, %cst [1] : vector<8x128xf32> to vector<8xf32>
    %4 = vector.shape_cast %3 : vector<8xf32> to vector<8x1xf32>
    %cst_3 = arith.constant 1.000000e-24 : f32
    %5 = vector.broadcast %cst_3 : f32 to vector<8x1xf32>
    %6 = arith.maximumf %4, %5 : vector<8x1xf32>
    %7 = math.rsqrt %6 : vector<8x1xf32>
    %8 = arith.truncf %0 : vector<8x128xf32> to vector<8x128xbf16>
    %cst_4 = arith.constant dense<0.000000e+00> : vector<8x128xf32>
    %9 = tpu.matmul %8, %1, %cst_4 {dimension_numbers = #tpu.dot_dimension_numbers<[1], [0], [0], [1], [0, 0, 1, 1], [], []>} : vector<8x128xbf16>, vector<128x128xbf16>, vector<8x128xf32> -> vector<8x128xf32>
    %10 = vector.broadcast %7 : vector<8x1xf32> to vector<8x128xf32>
    %11 = arith.mulf %9, %10 : vector<8x128xf32>
    %12 = tpu.iota {dimensions = array<i32: 1>} : vector<8x128xi32>
    %c6_i32 = arith.constant 6 : i32
    %13 = vector.broadcast %c6_i32 : i32 to vector<8x128xi32>
    %14 = arith.cmpi slt, %12, %13 : vector<8x128xi32>
    %cst_5 = arith.constant 0xFF800000 : f32
    %15 = vector.broadcast %cst_5 : f32 to vector<8x128xf32>
    %16 = arith.select %14, %11, %15 : vector<8x128xi1>, vector<8x128xf32>
    %cst_6 = arith.constant dense<0xFF800000> : vector<8xf32>
    %17 = vector.multi_reduction <maximumf>, %16, %cst_6 [1] : vector<8x128xf32> to vector<8xf32>
    %18 = vector.shape_cast %17 : vector<8xf32> to vector<8x1xf32>
    %19 = vector.broadcast %18 : vector<8x1xf32> to vector<8x128xf32>
    %20 = arith.cmpf oeq, %16, %19 : vector<8x128xf32>
    %c128_i32 = arith.constant 128 : i32
    %21 = vector.broadcast %c128_i32 : i32 to vector<8x128xi32>
    %22 = arith.select %20, %12, %21 : vector<8x128xi1>, vector<8x128xi32>
    %cst_7 = arith.constant dense<2147483647> : vector<8xi32>
    %23 = vector.multi_reduction <minsi>, %22, %cst_7 [1] : vector<8x128xi32> to vector<8xi32>
    %24 = vector.shape_cast %23 : vector<8xi32> to vector<8x1xi32>
    %25 = vector.shape_cast %24 : vector<8x1xi32> to vector<8x1xi32>
    %26 = vector.broadcast %25 : vector<8x1xi32> to vector<8x128xi32>
    %c0_8 = arith.constant 0 : index
    %c0_9 = arith.constant 0 : index
    %27 = vector.load %arg3[%c0_8, %c0_9] : memref<8x128xi32, #tpu.memory_space<vmem>>, vector<8x128xi32>
    tpu.vector_store %arg3[%c0_8, %c0_9], %26 {strides = array<i32>} : memref<8x128xi32, #tpu.memory_space<vmem>>, vector<8x128xi32>,
    return
  }
  func.func @transform_0(%arg0: i32) -> (i32, i32) {
    %c0_i32 = arith.constant 0 : i32
    %c0_i32_0 = arith.constant 0 : i32
    return %arg0, %c0_i32 : i32, i32
  }
  func.func @transform_1(%arg0: i32) -> (i32, i32) {
    %c0_i32 = arith.constant 0 : i32
    %c0_i32_0 = arith.constant 0 : i32
    %c0_i32_1 = arith.constant 0 : i32
    return %c0_i32, %c0_i32_0 : i32, i32
  }
  func.func @transform_2(%arg0: i32) -> (i32, i32) {
    %c0_i32 = arith.constant 0 : i32
    %c0_i32_0 = arith.constant 0 : i32
    return %arg0, %c0_i32 : i32, i32
  }
}

</mosaic_0001>

<llo_original>
// kernel: tpu_custom_call.1
$region0: #{tpu_custom_call.1}
  #allocation0 [shape = 'u32[]', space=smem, size = 0x4, offset = 0x4, fixed_abs, tag = 'smem constant byte address 0x4 - core index']
  #allocation1 [shape = 'u32[72,128]{1,0:T(1,128)}', space=vmem, size = 0x9000, scoped, tag = 'internal scratch']
  %s0 = inlined_call_operand.hbm [shape: f32[8,128], index: 0, kind: input, shape index: {}]
  %s1 = inlined_call_operand.hbm [shape: bf16[128,128], index: 1, kind: input, shape index: {}]
  %s2 = inlined_call_operand.hbm [shape: s32[8,128], index: 2, kind: output, shape index: {}]
  %s3 = sld [smem:[#allocation0]]
  $region26: #{tpu_custom_call.1} parent=0
    _
  %s5 = ssub.s32 1, %s3
  %s6 = scalar_select 0, %s5, %s3
  $region1: #{tpu_custom_call.1} parent=0
    #allocation2 [shape = 'u8[4096]{0}', space=vmem, size = 0x1000, scoped, tag = 'input window, operand 0, single buffered']
    #allocation3 [shape = 's32[1]{0}', space=sflag, size = 0x4, scoped, tag = 'scoped memory for tpu_custom_call.1']
    #allocation4 [shape = 's32[1]{0}', space=sflag, size = 0x4, scoped, tag = 'scoped memory for tpu_custom_call.1']
    #allocation5 [shape = 'u8[32768]{0}', space=vmem, size = 0x8000, scoped, tag = 'input window, operand 1, single buffered']
    #allocation6 [shape = 's32[1]{0}', space=sflag, size = 0x4, scoped, tag = 'scoped memory for tpu_custom_call.1']
    #allocation7 [shape = 'u8[4096]{0}', space=vmem, size = 0x1000, scoped, tag = 'output window, operand 0, single buffered']
    %7 = vsyncpa [#allocation3], 0
    %8 = vsyncpa [#allocation6], 0
    %9 = vsyncpa [#allocation4], 0
    // Predicated region
    $region2: #{tpu_custom_call.1} parent=1 // pred_check
      _
    $region3: #{tpu_custom_call.1} parent=1 // pred_check_branch
      %11 = sbr.rel (0) target = $region5
    $region4: #{tpu_custom_call.1} parent=1 // pred_region
      %13 = vsyncadd [#allocation3], 0
      %s15 = sshll.u32 %s0, 4
      %s16 = int_to_ptr.hbm [resolvable:$true] %s15
      %s17 = sshll.u32 [#allocation2], 4
      %s18 = int_to_ptr.vmem [resolvable:$true] %s17
      %20 = dma.hbm_to_vmem [thread:$0]  %s16, 128, %s18, [#allocation3]
    $region5: #{tpu_custom_call.1} parent=1 // pred_fallthru
      _
    // Predicated region
    $region6: #{tpu_custom_call.1} parent=1 // pred_check
      _
    $region7: #{tpu_custom_call.1} parent=1 // pred_check_branch
      %22 = sbr.rel (0) target = $region9
    $region8: #{tpu_custom_call.1} parent=1 // pred_region
      %24 = vsyncadd [#allocation6], 0
      %s25 = sshll.u32 %s1, 4
      %s26 = int_to_ptr.hbm [resolvable:$true] %s25
      %s27 = sshll.u32 [#allocation5], 4
      %s28 = int_to_ptr.vmem [resolvable:$true] %s27
      %33 = dma.hbm_to_vmem [thread:$0]  %s26, 1024, %s28, [#allocation6], 64, 64, 4
    $region9: #{tpu_custom_call.1} parent=1 // pred_fallthru
      _
    // Predicated region
    $region10: #{tpu_custom_call.1} parent=1 // pred_check
      _
    $region11: #{tpu_custom_call.1} parent=1 // pred_check_branch
      %35 = sbr.rel (0) target = $region13
    $region12: #{tpu_custom_call.1} parent=1 // pred_region
      %37 = dma.done [#allocation3], 128
    $region13: #{tpu_custom_call.1} parent=1 // pred_fallthru
      _
    // Predicated region
    $region14: #{tpu_custom_call.1} parent=1 // pred_check
      _
    $region15: #{tpu_custom_call.1} parent=1 // pred_check_branch
      %39 = sbr.rel (0) target = $region17
    $region16: #{tpu_custom_call.1} parent=1 // pred_region
      %41 = dma.done [#allocation6], 1024
    $region17: #{tpu_custom_call.1} parent=1 // pred_fallthru
      _
    %v42 = vld [vmem:[#allocation2] sm:$0xff]
    %v43 = vld [vmem:[#allocation5] sm:$0xf]
    %v44 = vld [vmem:[#allocation5 + $0x4] sm:$0xf]
    %v45 = vld [vmem:[#allocation5 + $0x8] sm:$0xf]
    %v46 = vld [vmem:[#allocation5 + $0xc] sm:$0xf]
    %v47 = vld [vmem:[#allocation5 + $0x10] sm:$0xf]
    %v48 = vld [vmem:[#allocation5 + $0x14] sm:$0xf]
    %v49 = vld [vmem:[#allocation5 + $0x18] sm:$0xf]
    %v50 = vld [vmem:[#allocation5 + $0x1c] sm:$0xf]
    %v51 = vld [vmem:[#allocation5 + $0x20] sm:$0xf]
    %v52 = vld [vmem:[#allocation5 + $0x24] sm:$0xf]
    %v53 = vld [vmem:[#allocation5 + $0x28] sm:$0xf]
    %v54 = vld [vmem:[#allocation5 + $0x2c] sm:$0xf]
    %v55 = vld [vmem:[#allocation5 + $0x30] sm:$0xf]
    %v56 = vld [vmem:[#allocation5 + $0x34] sm:$0xf]
    %v57 = vld [vmem:[#allocation5 + $0x38] sm:$0xf]
    %v58 = vld [vmem:[#allocation5 + $0x3c] sm:$0xf]
    %v59 = vmul.f32 %v42, %v42
    %60 = vadd.xlane.f32.xlu0 %v59
    %v61 = vpop.xlane.xlu0 %60
    %v62 = vmax.f32 %v61, 1e-24
    %v63 = vrsqrt.pop %v62
    %v64 = vmul.f32 %v63, %v62
    %v65 = vmul.f32 %v64, %v63
    %v66 = vmul.f32 0.5, %v65
    %v67 = vsub.f32 1.5, %v66
    %v68 = vmul.f32 %v63, %v67
    %vm69 = vweird.f32 %v62
    %vm70 = vweird.f32 %v63
    %vm71 = vmor %vm69, %vm70
    %v72 = vsel %vm71, %v63, %v68
    %v73 = vpack.c.bf16 %v42, %v42
    %v90 = vunpack.c.l.b16 %v43
    %v91 = vunpack.c.l.b16 %v44
    %v92 = vunpack.c.l.b16 %v45
    %v93 = vunpack.c.l.b16 %v46
    %v94 = vunpack.c.l.b16 %v47
    %v95 = vunpack.c.l.b16 %v48
    %v96 = vunpack.c.l.b16 %v49
    %v97 = vunpack.c.l.b16 %v50
    %v98 = vunpack.c.l.b16 %v51
    %v99 = vunpack.c.l.b16 %v52
    %v100 = vunpack.c.l.b16 %v53
    %v101 = vunpack.c.l.b16 %v54
    %v102 = vunpack.c.l.b16 %v55
    %v103 = vunpack.c.l.b16 %v56
    %v104 = vunpack.c.l.b16 %v57
    %v105 = vunpack.c.l.b16 %v58
    %v106 = vpack.c.b16 %v91, %v90
    %v107 = vpack.c.b16 %v93, %v92
    %v108 = vpack.c.b16 %v95, %v94
    %v109 = vpack.c.b16 %v97, %v96
    %v110 = vpack.c.b16 %v99, %v98
    %v111 = vpack.c.b16 %v101, %v100
    %v112 = vpack.c.b16 %v103, %v102
    %v113 = vpack.c.b16 %v105, %v104
    %122 = vmatpush.bf16.msra.mxu0 %v113
    %123 = vmatpush.bf16.msra.mxu0 %v112
    %124 = vmatpush.bf16.msra.mxu0 %v111
    %125 = vmatpush.bf16.msra.mxu0 %v110
    %126 = vmatpush.bf16.msra.mxu0 %v109
    %127 = vmatpush.bf16.msra.mxu0 %v108
    %128 = vmatpush.bf16.msra.mxu0 %v107
    %129 = vmatpush.bf16.msra.mxu0 %v106
    %130 = vmatmul.bf16.gmra.mxu0 %v73
    %v131 = vpop.f32.mrf.mxu0
    %v132 = vadd.f32 0.0, %v131
    %v133 = vpop.f32.mrf.mxu0
    %134 = vdwg.mxu0
    %v135 = vmul.f32 %v132, %v72
    %v136 = vlaneseq
    %v137 = vand.u32 %v136, 127
    %vm138 = vcmp.lt.s32.totalorder %v137, 6
    %v139 = vsel %vm138, %v135, -inf
    %140 = vmax.xlane.f32.xlu0 %v139
    %v141 = vpop.xlane.xlu0 %140
    %vm142 = vcmp.eq.f32.partialorder %v139, %v141
    %v143 = vsel %vm142, %v137, 128
    %v144 = vand.u32 %v143, 65535
    %v145 = vshra.s32 %v143, 16
    %v146 = vcvt.s32.f32 %v144
    %v147 = vcvt.s32.f32 %v145
    %148 = vmin.xlane.f32.xlu0 %v147
    %v149 = vpop.xlane.xlu0 %148
    %vm150 = vcmp.eq.f32.partialorder %v147, %v149
    %v151 = vsel %vm150, %v146, inf
    %152 = vmin.xlane.f32.xlu0 %v151
    %v153 = vpop.xlane.xlu0 %152
    %v154 = vcvt.f32.s32 %v153
    %v155 = vcvt.f32.s32 %v149
    %v156 = vshll.u32 %v155, 16
    %v157 = vadd.s32 %v156, %v154
    %158 = vst [vmem:[#allocation7] sm:$0xff] %v157
    // Predicated region
    $region18: #{tpu_custom_call.1} parent=1 // pred_check
      _
    $region19: #{tpu_custom_call.1} parent=1 // pred_check_branch
      %160 = sbr.rel (0) target = $region21
    $region20: #{tpu_custom_call.1} parent=1 // pred_region
      %162 = vsyncadd [#allocation4], 0
      %s164 = sshll.u32 [#allocation7], 4
      %s165 = int_to_ptr.vmem [resolvable:$true] %s164
      %s166 = sshll.u32 %s2, 4
      %s167 = int_to_ptr.hbm [resolvable:$true] %s166
      %169 = dma.vmem_to_hbm [thread:$0]  %s165, 128, %s167, [#allocation4]
    $region21: #{tpu_custom_call.1} parent=1 // pred_fallthru
      _
    // Predicated region
    $region22: #{tpu_custom_call.1} parent=1 // pred_check
      _
    $region23: #{tpu_custom_call.1} parent=1 // pred_check_branch
      %171 = sbr.rel (0) target = $region25
    $region24: #{tpu_custom_call.1} parent=1 // pred_region
      %173 = dma.done [#allocation4], 128
    $region25: #{tpu_custom_call.1} parent=1 // pred_fallthru
      _
    %174 = vsyncpa [#allocation3], 1
    %175 = vsyncpa [#allocation6], 1
    %176 = vsyncpa [#allocation4], 1

</llo_original>
